<compile_context>
chip_gen: v7x
topology: tpu7x:2x2x1
jax: 0.10.0
libtpu: 0.0.40
codegen_flags: <defaults>
</compile_context>

<pallas_src>
import jax
import jax.numpy as jnp
from jax.experimental import pallas as pl
from jax.experimental.pallas import tpu as pltpu


# --------------------------------------------------------------------------
# Kernel
# --------------------------------------------------------------------------
def _spec_cutout_kernel(rects_ref, x_ref, o_ref):
    """rects_ref: SMEM int32 (4*R,) = [fs, fe, ts, te] * R (scalar prefetch).
    x_ref/o_ref: VMEM (B, f_tile, t_tile) blocks of the spectrogram."""
    fi = pl.program_id(0)   # freq-block index
    ti = pl.program_id(1)   # time-block index

    _, f_tile, t_tile = x_ref.shape
    f0 = fi * f_tile
    t0 = ti * t_tile
    f1 = f0 + f_tile
    t1 = t0 + t_tile

    n_rects = rects_ref.shape[0] // 4

    # ---- scalar early-out: does ANY (non-empty) rectangle touch this block? --
    any_hit = None
    for r in range(n_rects):               # static unroll; n_rects is small
        fs = rects_ref[4 * r + 0]
        fe = rects_ref[4 * r + 1]
        ts = rects_ref[4 * r + 2]
        te = rects_ref[4 * r + 3]
        inter = ((fe > fs) & (te > ts)
                 & (fs < f1) & (fe > f0)
                 & (ts < t1) & (te > t0))
        any_hit = inter if any_hit is None else (any_hit | inter)

    @pl.when(jnp.logical_not(any_hit))
    def _copy_only():
        # Pure streaming copy -- no iota, no compares, HBM-bound.
        o_ref[...] = x_ref[...]

    @pl.when(any_hit)
    def _apply_masks():
        x = x_ref[...]
        # Separable 1-D coordinate vectors (built once, reused per rect).
        f_ids = f0 + jax.lax.broadcasted_iota(jnp.int32, (f_tile, 1), 0)
        t_ids = t0 + jax.lax.broadcasted_iota(jnp.int32, (1, t_tile), 1)
        cut = None
        for r in range(n_rects):
            fs = rects_ref[4 * r + 0]
            fe = rects_ref[4 * r + 1]
            ts = rects_ref[4 * r + 2]
            te = rects_ref[4 * r + 3]
            fm = (f_ids >= fs) & (f_ids < fe)     # (f_tile, 1)
            tm = (t_ids >= ts) & (t_ids < te)     # (1, t_tile)
            hit = fm & tm                         # only full-tile op per rect
            cut = hit if cut is None else (cut | hit)
        # Single select in the original dtype.
        o_ref[...] = jnp.where(cut[None, :, :], jnp.zeros((), x.dtype), x)


# --------------------------------------------------------------------------
# Tiling choice (lane-dense, dtype-aware sublane, VMEM-safe on v5e/v6e/v7x)
# --------------------------------------------------------------------------
def _choose_tiles(B, F, T, dtype, target_block_bytes=2 * 1024 * 1024):
    itemsize = jnp.dtype(dtype).itemsize
    # Native sublane multiple: 8 for f32, 16 for bf16, 32 for int8/fp8.
    sub_mult = max(8, 32 // itemsize)

    # Lane (time) tile: largest divisor of T that is a multiple of 128, capped
    # at 1024.  If T is not a multiple of 128, the full dim is the only legal
    # block width.
    if T % 128 == 0:
        t_tile = 128
        for cand in range(256, min(T, 1024) + 1, 128):
            if T % cand == 0:
                t_tile = cand
    else:
        t_tile = T

    # Sublane (freq) tile: largest divisor of F that is a multiple of sub_mult
    # and keeps a (B, f_tile, t_tile) block under the per-block budget, so
    # double-buffered input + output stays inside every generation's scoped
    # VMEM (incl. v5e's 16 MiB default and v7x's 64 MiB physical).
    if F % sub_mult == 0:
        max_f = max(sub_mult, target_block_bytes // max(1, B * t_tile * itemsize))
        f_tile = sub_mult
        for cand in range(2 * sub_mult, min(F, 512) + 1, sub_mult):
            if F % cand == 0 and cand <= max_f:
                f_tile = cand
    else:
        f_tile = F

    # v7x megacore: try to guarantee >= 2 grid blocks so both TensorCores get
    # work (both grid axes are "parallel").  Halving preserves divisibility.
    if (F // f_tile) * (T // t_tile) < 2:
        if t_tile % 2 == 0 and (t_tile // 2) % 128 == 0:
            t_tile //= 2
        elif f_tile % 2 == 0 and (f_tile // 2) % sub_mult == 0:
            f_tile //= 2

    return f_tile, t_tile


# --------------------------------------------------------------------------
# Rectangle sampling (matches torch's _create_mask semantics; freq_width is
# used for BOTH axes, exactly as in the original forward()).
# --------------------------------------------------------------------------
def _sample_rects(key, shape, rect_masks, freq_width, time_width):
    del time_width  # quirk of the original module: freq_width used for both axes
    _, F, T = shape
    bounds = []
    for _ in range(rect_masks):
        key, kf1, kf2, kt1, kt2 = jax.random.split(key, 5)
        # freq axis
        fv = jax.random.uniform(kf1, ()) * freq_width
        fmin = jax.random.uniform(kf2, ()) * (F - fv)
        fs = jnp.floor(fmin).astype(jnp.int32)
        fe = fs + jnp.floor(fv).astype(jnp.int32)
        # time axis (mask_param = freq_width, as in the original code)
        tv = jax.random.uniform(kt1, ()) * freq_width
        tmin = jax.random.uniform(kt2, ()) * (T - tv)
        ts = jnp.floor(tmin).astype(jnp.int32)
        te = ts + jnp.floor(tv).astype(jnp.int32)
        bounds += [fs, fe, ts, te]
    return jnp.stack(bounds).astype(jnp.int32)   # flat (4 * rect_masks,)


# --------------------------------------------------------------------------
# Public wrapper (forward pass of SpecCutout)
# --------------------------------------------------------------------------
def spec_cutout(x, key, *, rect_masks=5, time_width=5, freq_width=20,
                training=True, target_block_bytes=2 * 1024 * 1024):
    """In-place-style SpecCutout.  For the input_output alias to avoid a
    defensive HBM copy, jit the caller with x donated (donate_argnums)."""
    if (not training) or rect_masks == 0:
        return x

    B, F, T = x.shape
    rects = _sample_rects(key, (B, F, T), rect_masks, freq_width, time_width)

    f_tile, t_tile = _choose_tiles(B, F, T, x.dtype, target_block_bytes)
    grid = (F // f_tile, T // t_tile)

    # index_map receives the scalar-prefetch ref as a trailing positional arg.
    block_spec = pl.BlockSpec((B, f_tile, t_tile),
                              lambda i, j, rects_ref: (0, i, j))

    return pl.pallas_call(
        _spec_cutout_kernel,
        out_shape=jax.ShapeDtypeStruct(x.shape, x.dtype),
        grid_spec=pltpu.PrefetchScalarGridSpec(
            num_scalar_prefetch=1,
            grid=grid,
            in_specs=[block_spec],
            out_specs=block_spec,
        ),
        # inputs are (rects, x) -> x is flat input index 1; alias it to output 0
        input_output_aliases={1: 0},
        compiler_params=pltpu.CompilerParams(
            dimension_semantics=("parallel", "parallel"),
            vmem_limit_bytes=32 * 1024 * 1024,
        ),
    )(rects, x)


# --------------------------------------------------------------------------
# Pure-JAX reference (sequential masked_fill; zeroing commutes)
# --------------------------------------------------------------------------
def _reference(x, rects):
    _, F, T = x.shape
    f_ids = jnp.arange(F)
    t_ids = jnp.arange(T)
    ref = x
    n_rects = rects.shape[0] // 4
    for r in range(n_rects):
        fs, fe = rects[4 * r + 0], rects[4 * r + 1]
        ts, te = rects[4 * r + 2], rects[4 * r + 3]
        fm = (f_ids >= fs) & (f_ids < fe)
        tm = (t_ids >= ts) & (t_ids < te)
        ref = jnp.where((fm[:, None] & tm[None, :])[None, :, :], 0.0, ref)
    return ref


# --------------------------------------------------------------------------
# Demo / self-check
# --------------------------------------------------------------------------
if __name__ == "__main__":
    key = jax.random.PRNGKey(0)
    kx, kr, kx2, kr2 = jax.random.split(key, 4)

    # --- case 1: f32, standard spectrogram-ish shape ---
    B, F, T = 2, 64, 512
    RECTS, FREQ_W, TIME_W = 5, 20, 5
    x = jax.random.normal(kx, (B, F, T), dtype=jnp.float32)

    y = spec_cutout(x, kr, rect_masks=RECTS, time_width=TIME_W,
                    freq_width=FREQ_W, training=True)
    y = jax.block_until_ready(y)

    rects = _sample_rects(kr, (B, F, T), RECTS, FREQ_W, TIME_W)
    ref = _reference(x, rects)
    assert y.shape == x.shape and y.dtype == x.dtype
    assert jnp.allclose(y, ref), "Pallas SpecCutout mismatch vs reference (f32)"

    # --- case 2: bf16 (exercises dtype-aware sublane tiling + early-out) ---
    B2, F2, T2 = 2, 48, 256
    x2 = jax.random.normal(kx2, (B2, F2, T2), dtype=jnp.bfloat16)
    y2 = spec_cutout(x2, kr2, rect_masks=3, time_width=TIME_W,
                     freq_width=FREQ_W, training=True)
    y2 = jax.block_until_ready(y2)
    rects2 = _sample_rects(kr2, (B2, F2, T2), 3, FREQ_W, TIME_W)
    ref2 = _reference(x2, rects2)
    assert y2.dtype == x2.dtype
    assert jnp.allclose(y2.astype(jnp.float32), ref2.astype(jnp.float32)), \
        "Pallas SpecCutout mismatch vs reference (bf16)"

    print("KERNEL_OK")
</pallas_src>

<mosaic_0001>
module attributes {stable_mosaic.version = 11 : i64} {
  func.func @_spec_cutout_kernel(%arg0: i32, %arg1: i32, %arg2: memref<20xi32, #tpu.memory_space<smem>>, %arg3: memref<2x64x256xf32, #tpu.memory_space<vmem>>, %arg4: memref<2x64x256xf32, #tpu.memory_space<vmem>>) attributes {dimension_semantics = [#tpu.dimension_semantics<parallel>, #tpu.dimension_semantics<parallel>], iteration_bounds = array<i64: 1, 2>, scalar_prefetch = 1 : i64, scratch_operands = 0 : i64, tpu.core_type = #tpu.core_type<tc>, window_params = [{transform_indices = @transform_0, window_bounds = array<i64: 2, 64, 256>}, {transform_indices = @transform_1, window_bounds = array<i64: 2, 64, 256>}]} {
    %c64_i32 = arith.constant 64 : i32
    %0 = arith.muli %arg0, %c64_i32 : i32
    %c256_i32 = arith.constant 256 : i32
    %1 = arith.muli %arg1, %c256_i32 : i32
    %c64_i32_0 = arith.constant 64 : i32
    %2 = arith.addi %0, %c64_i32_0 : i32
    %c256_i32_1 = arith.constant 256 : i32
    %3 = arith.addi %1, %c256_i32_1 : i32
    %c0 = arith.constant 0 : index
    %4 = memref.load %arg2[%c0] : memref<20xi32, #tpu.memory_space<smem>>
    %c1 = arith.constant 1 : index
    %5 = memref.load %arg2[%c1] : memref<20xi32, #tpu.memory_space<smem>>
    %c2 = arith.constant 2 : index
    %6 = memref.load %arg2[%c2] : memref<20xi32, #tpu.memory_space<smem>>
    %c3 = arith.constant 3 : index
    %7 = memref.load %arg2[%c3] : memref<20xi32, #tpu.memory_space<smem>>
    %8 = arith.cmpi sgt, %5, %4 : i32
    %9 = arith.cmpi sgt, %7, %6 : i32
    %10 = arith.andi %8, %9 : i1
    %11 = arith.cmpi slt, %4, %2 : i32
    %12 = arith.andi %10, %11 : i1
    %13 = arith.cmpi sgt, %5, %0 : i32
    %14 = arith.andi %12, %13 : i1
    %15 = arith.cmpi slt, %6, %3 : i32
    %16 = arith.andi %14, %15 : i1
    %17 = arith.cmpi sgt, %7, %1 : i32
    %18 = arith.andi %16, %17 : i1
    %c4 = arith.constant 4 : index
    %19 = memref.load %arg2[%c4] : memref<20xi32, #tpu.memory_space<smem>>
    %c5 = arith.constant 5 : index
    %20 = memref.load %arg2[%c5] : memref<20xi32, #tpu.memory_space<smem>>
    %c6 = arith.constant 6 : index
    %21 = memref.load %arg2[%c6] : memref<20xi32, #tpu.memory_space<smem>>
    %c7 = arith.constant 7 : index
    %22 = memref.load %arg2[%c7] : memref<20xi32, #tpu.memory_space<smem>>
    %23 = arith.cmpi sgt, %20, %19 : i32
    %24 = arith.cmpi sgt, %22, %21 : i32
    %25 = arith.andi %23, %24 : i1
    %26 = arith.cmpi slt, %19, %2 : i32
    %27 = arith.andi %25, %26 : i1
    %28 = arith.cmpi sgt, %20, %0 : i32
    %29 = arith.andi %27, %28 : i1
    %30 = arith.cmpi slt, %21, %3 : i32
    %31 = arith.andi %29, %30 : i1
    %32 = arith.cmpi sgt, %22, %1 : i32
    %33 = arith.andi %31, %32 : i1
    %34 = arith.ori %18, %33 : i1
    %c8 = arith.constant 8 : index
    %35 = memref.load %arg2[%c8] : memref<20xi32, #tpu.memory_space<smem>>
    %c9 = arith.constant 9 : index
    %36 = memref.load %arg2[%c9] : memref<20xi32, #tpu.memory_space<smem>>
    %c10 = arith.constant 10 : index
    %37 = memref.load %arg2[%c10] : memref<20xi32, #tpu.memory_space<smem>>
    %c11 = arith.constant 11 : index
    %38 = memref.load %arg2[%c11] : memref<20xi32, #tpu.memory_space<smem>>
    %39 = arith.cmpi sgt, %36, %35 : i32
    %40 = arith.cmpi sgt, %38, %37 : i32
    %41 = arith.andi %39, %40 : i1
    %42 = arith.cmpi slt, %35, %2 : i32
    %43 = arith.andi %41, %42 : i1
    %44 = arith.cmpi sgt, %36, %0 : i32
    %45 = arith.andi %43, %44 : i1
    %46 = arith.cmpi slt, %37, %3 : i32
    %47 = arith.andi %45, %46 : i1
    %48 = arith.cmpi sgt, %38, %1 : i32
    %49 = arith.andi %47, %48 : i1
    %50 = arith.ori %34, %49 : i1
    %c12 = arith.constant 12 : index
    %51 = memref.load %arg2[%c12] : memref<20xi32, #tpu.memory_space<smem>>
    %c13 = arith.constant 13 : index
    %52 = memref.load %arg2[%c13] : memref<20xi32, #tpu.memory_space<smem>>
    %c14 = arith.constant 14 : index
    %53 = memref.load %arg2[%c14] : memref<20xi32, #tpu.memory_space<smem>>
    %c15 = arith.constant 15 : index
    %54 = memref.load %arg2[%c15] : memref<20xi32, #tpu.memory_space<smem>>
    %55 = arith.cmpi sgt, %52, %51 : i32
    %56 = arith.cmpi sgt, %54, %53 : i32
    %57 = arith.andi %55, %56 : i1
    %58 = arith.cmpi slt, %51, %2 : i32
    %59 = arith.andi %57, %58 : i1
    %60 = arith.cmpi sgt, %52, %0 : i32
    %61 = arith.andi %59, %60 : i1
    %62 = arith.cmpi slt, %53, %3 : i32
    %63 = arith.andi %61, %62 : i1
    %64 = arith.cmpi sgt, %54, %1 : i32
    %65 = arith.andi %63, %64 : i1
    %66 = arith.ori %50, %65 : i1
    %c16 = arith.constant 16 : index
    %67 = memref.load %arg2[%c16] : memref<20xi32, #tpu.memory_space<smem>>
    %c17 = arith.constant 17 : index
    %68 = memref.load %arg2[%c17] : memref<20xi32, #tpu.memory_space<smem>>
    %c18 = arith.constant 18 : index
    %69 = memref.load %arg2[%c18] : memref<20xi32, #tpu.memory_space<smem>>
    %c19 = arith.constant 19 : index
    %70 = memref.load %arg2[%c19] : memref<20xi32, #tpu.memory_space<smem>>
    %71 = arith.cmpi sgt, %68, %67 : i32
    %72 = arith.cmpi sgt, %70, %69 : i32
    %73 = arith.andi %71, %72 : i1
    %74 = arith.cmpi slt, %67, %2 : i32
    %75 = arith.andi %73, %74 : i1
    %76 = arith.cmpi sgt, %68, %0 : i32
    %77 = arith.andi %75, %76 : i1
    %78 = arith.cmpi slt, %69, %3 : i32
    %79 = arith.andi %77, %78 : i1
    %80 = arith.cmpi sgt, %70, %1 : i32
    %81 = arith.andi %79, %80 : i1
    %82 = arith.ori %66, %81 : i1
    %true = arith.constant true
    %83 = arith.xori %82, %true : i1
    %84 = arith.extui %83 : i1 to i32
    %c0_i32 = arith.constant 0 : i32
    %85 = arith.cmpi ne, %84, %c0_i32 : i32
    scf.if %85 {
      %c0_3 = arith.constant 0 : index
      %c0_4 = arith.constant 0 : index
      %c0_5 = arith.constant 0 : index
      %88 = vector.load %arg3[%c0_3, %c0_4, %c0_5] : memref<2x64x256xf32, #tpu.memory_space<vmem>>, vector<2x64x256xf32>
      %c0_6 = arith.constant 0 : index
      %c0_7 = arith.constant 0 : index
      %c0_8 = arith.constant 0 : index
      %89 = vector.load %arg4[%c0_6, %c0_7, %c0_8] : memref<2x64x256xf32, #tpu.memory_space<vmem>>, vector<2x64x256xf32>
      tpu.vector_store %arg4[%c0_6, %c0_7, %c0_8], %88 {strides = array<i32>} : memref<2x64x256xf32, #tpu.memory_space<vmem>>, vector<2x64x256xf32>,
    } else {
    }
    %86 = arith.extui %82 : i1 to i32
    %c0_i32_2 = arith.constant 0 : i32
    %87 = arith.cmpi ne, %86, %c0_i32_2 : i32
    scf.if %87 {
      %c0_3 = arith.constant 0 : index
      %c0_4 = arith.constant 0 : index
      %c0_5 = arith.constant 0 : index
      %88 = vector.load %arg3[%c0_3, %c0_4, %c0_5] : memref<2x64x256xf32, #tpu.memory_space<vmem>>, vector<2x64x256xf32>
      %89 = tpu.iota {dimensions = array<i32: 0>} : vector<64x1xi32>
      %90 = vector.broadcast %0 : i32 to vector<64x1xi32>
      %91 = arith.addi %90, %89 : vector<64x1xi32>
      %92 = tpu.iota {dimensions = array<i32: 1>} : vector<1x256xi32>
      %93 = vector.broadcast %1 : i32 to vector<1x256xi32>
      %94 = arith.addi %93, %92 : vector<1x256xi32>
      %c0_6 = arith.constant 0 : index
      %95 = memref.load %arg2[%c0_6] : memref<20xi32, #tpu.memory_space<smem>>
      %c1_7 = arith.constant 1 : index
      %96 = memref.load %arg2[%c1_7] : memref<20xi32, #tpu.memory_space<smem>>
      %c2_8 = arith.constant 2 : index
      %97 = memref.load %arg2[%c2_8] : memref<20xi32, #tpu.memory_space<smem>>
      %c3_9 = arith.constant 3 : index
      %98 = memref.load %arg2[%c3_9] : memref<20xi32, #tpu.memory_space<smem>>
      %99 = vector.broadcast %95 : i32 to vector<64x1xi32>
      %100 = arith.cmpi sge, %91, %99 : vector<64x1xi32>
      %101 = vector.broadcast %96 : i32 to vector<64x1xi32>
      %102 = arith.cmpi slt, %91, %101 : vector<64x1xi32>
      %103 = arith.andi %100, %102 : vector<64x1xi1>
      %104 = vector.broadcast %97 : i32 to vector<1x256xi32>
      %105 = arith.cmpi sge, %94, %104 : vector<1x256xi32>
      %106 = vector.broadcast %98 : i32 to vector<1x256xi32>
      %107 = arith.cmpi slt, %94, %106 : vector<1x256xi32>
      %108 = arith.andi %105, %107 : vector<1x256xi1>
      %109 = vector.broadcast %103 : vector<64x1xi1> to vector<64x256xi1>
      %110 = vector.broadcast %108 : vector<1x256xi1> to vector<64x256xi1>
      %111 = arith.andi %109, %110 : vector<64x256xi1>
      %c4_10 = arith.constant 4 : index
      %112 = memref.load %arg2[%c4_10] : memref<20xi32, #tpu.memory_space<smem>>
      %c5_11 = arith.constant 5 : index
      %113 = memref.load %arg2[%c5_11] : memref<20xi32, #tpu.memory_space<smem>>
      %c6_12 = arith.constant 6 : index
      %114 = memref.load %arg2[%c6_12] : memref<20xi32, #tpu.memory_space<smem>>
      %c7_13 = arith.constant 7 : index
      %115 = memref.load %arg2[%c7_13] : memref<20xi32, #tpu.memory_space<smem>>
      %116 = vector.broadcast %112 : i32 to vector<64x1xi32>
      %117 = arith.cmpi sge, %91, %116 : vector<64x1xi32>
      %118 = vector.broadcast %113 : i32 to vector<64x1xi32>
      %119 = arith.cmpi slt, %91, %118 : vector<64x1xi32>
      %120 = arith.andi %117, %119 : vector<64x1xi1>
      %121 = vector.broadcast %114 : i32 to vector<1x256xi32>
      %122 = arith.cmpi sge, %94, %121 : vector<1x256xi32>
      %123 = vector.broadcast %115 : i32 to vector<1x256xi32>
      %124 = arith.cmpi slt, %94, %123 : vector<1x256xi32>
      %125 = arith.andi %122, %124 : vector<1x256xi1>
      %126 = vector.broadcast %120 : vector<64x1xi1> to vector<64x256xi1>
      %127 = vector.broadcast %125 : vector<1x256xi1> to vector<64x256xi1>
      %128 = arith.andi %126, %127 : vector<64x256xi1>
      %129 = arith.ori %111, %128 : vector<64x256xi1>
      %c8_14 = arith.constant 8 : index
      %130 = memref.load %arg2[%c8_14] : memref<20xi32, #tpu.memory_space<smem>>
      %c9_15 = arith.constant 9 : index
      %131 = memref.load %arg2[%c9_15] : memref<20xi32, #tpu.memory_space<smem>>
      %c10_16 = arith.constant 10 : index
      %132 = memref.load %arg2[%c10_16] : memref<20xi32, #tpu.memory_space<smem>>
      %c11_17 = arith.constant 11 : index
      %133 = memref.load %arg2[%c11_17] : memref<20xi32, #tpu.memory_space<smem>>
      %134 = vector.broadcast %130 : i32 to vector<64x1xi32>
      %135 = arith.cmpi sge, %91, %134 : vector<64x1xi32>
      %136 = vector.broadcast %131 : i32 to vector<64x1xi32>
      %137 = arith.cmpi slt, %91, %136 : vector<64x1xi32>
      %138 = arith.andi %135, %137 : vector<64x1xi1>
      %139 = vector.broadcast %132 : i32 to vector<1x256xi32>
      %140 = arith.cmpi sge, %94, %139 : vector<1x256xi32>
      %141 = vector.broadcast %133 : i32 to vector<1x256xi32>
      %142 = arith.cmpi slt, %94, %141 : vector<1x256xi32>
      %143 = arith.andi %140, %142 : vector<1x256xi1>
      %144 = vector.broadcast %138 : vector<64x1xi1> to vector<64x256xi1>
      %145 = vector.broadcast %143 : vector<1x256xi1> to vector<64x256xi1>
      %146 = arith.andi %144, %145 : vector<64x256xi1>
      %147 = arith.ori %129, %146 : vector<64x256xi1>
      %c12_18 = arith.constant 12 : index
      %148 = memref.load %arg2[%c12_18] : memref<20xi32, #tpu.memory_space<smem>>
      %c13_19 = arith.constant 13 : index
      %149 = memref.load %arg2[%c13_19] : memref<20xi32, #tpu.memory_space<smem>>
      %c14_20 = arith.constant 14 : index
      %150 = memref.load %arg2[%c14_20] : memref<20xi32, #tpu.memory_space<smem>>
      %c15_21 = arith.constant 15 : index
      %151 = memref.load %arg2[%c15_21] : memref<20xi32, #tpu.memory_space<smem>>
      %152 = vector.broadcast %148 : i32 to vector<64x1xi32>
      %153 = arith.cmpi sge, %91, %152 : vector<64x1xi32>
      %154 = vector.broadcast %149 : i32 to vector<64x1xi32>
      %155 = arith.cmpi slt, %91, %154 : vector<64x1xi32>
      %156 = arith.andi %153, %155 : vector<64x1xi1>
      %157 = vector.broadcast %150 : i32 to vector<1x256xi32>
      %158 = arith.cmpi sge, %94, %157 : vector<1x256xi32>
      %159 = vector.broadcast %151 : i32 to vector<1x256xi32>
      %160 = arith.cmpi slt, %94, %159 : vector<1x256xi32>
      %161 = arith.andi %158, %160 : vector<1x256xi1>
      %162 = vector.broadcast %156 : vector<64x1xi1> to vector<64x256xi1>
      %163 = vector.broadcast %161 : vector<1x256xi1> to vector<64x256xi1>
      %164 = arith.andi %162, %163 : vector<64x256xi1>
      %165 = arith.ori %147, %164 : vector<64x256xi1>
      %c16_22 = arith.constant 16 : index
      %166 = memref.load %arg2[%c16_22] : memref<20xi32, #tpu.memory_space<smem>>
      %c17_23 = arith.constant 17 : index
      %167 = memref.load %arg2[%c17_23] : memref<20xi32, #tpu.memory_space<smem>>
      %c18_24 = arith.constant 18 : index
      %168 = memref.load %arg2[%c18_24] : memref<20xi32, #tpu.memory_space<smem>>
      %c19_25 = arith.constant 19 : index
      %169 = memref.load %arg2[%c19_25] : memref<20xi32, #tpu.memory_space<smem>>
      %170 = vector.broadcast %166 : i32 to vector<64x1xi32>
      %171 = arith.cmpi sge, %91, %170 : vector<64x1xi32>
      %172 = vector.broadcast %167 : i32 to vector<64x1xi32>
      %173 = arith.cmpi slt, %91, %172 : vector<64x1xi32>
      %174 = arith.andi %171, %173 : vector<64x1xi1>
      %175 = vector.broadcast %168 : i32 to vector<1x256xi32>
      %176 = arith.cmpi sge, %94, %175 : vector<1x256xi32>
      %177 = vector.broadcast %169 : i32 to vector<1x256xi32>
      %178 = arith.cmpi slt, %94, %177 : vector<1x256xi32>
      %179 = arith.andi %176, %178 : vector<1x256xi1>
      %180 = vector.broadcast %174 : vector<64x1xi1> to vector<64x256xi1>
      %181 = vector.broadcast %179 : vector<1x256xi1> to vector<64x256xi1>
      %182 = arith.andi %180, %181 : vector<64x256xi1>
      %183 = arith.ori %165, %182 : vector<64x256xi1>
      %184 = vector.shape_cast %183 : vector<64x256xi1> to vector<1x64x256xi1>
      %cst = arith.constant 0.000000e+00 : f32
      %185 = vector.shape_cast %184 : vector<1x64x256xi1> to vector<1x64x256xi1>
      %186 = vector.broadcast %185 : vector<1x64x256xi1> to vector<2x64x256xi1>
      %187 = vector.broadcast %cst : f32 to vector<2x64x256xf32>
      %188 = arith.select %186, %187, %88 : vector<2x64x256xi1>, vector<2x64x256xf32>
      %c0_26 = arith.constant 0 : index
      %c0_27 = arith.constant 0 : index
      %c0_28 = arith.constant 0 : index
      %189 = vector.load %arg4[%c0_26, %c0_27, %c0_28] : memref<2x64x256xf32, #tpu.memory_space<vmem>>, vector<2x64x256xf32>
      tpu.vector_store %arg4[%c0_26, %c0_27, %c0_28], %188 {strides = array<i32>} : memref<2x64x256xf32, #tpu.memory_space<vmem>>, vector<2x64x256xf32>,
    } else {
    }
    return
  }
  func.func @transform_0(%arg0: i32, %arg1: i32, %arg2: memref<20xi32, #tpu.memory_space<smem>>) -> (i32, i32, i32) {
    %c0_i32 = arith.constant 0 : i32
    %c0_i32_0 = arith.constant 0 : i32
    return %c0_i32, %arg0, %arg1 : i32, i32, i32
  }
  func.func @transform_1(%arg0: i32, %arg1: i32, %arg2: memref<20xi32, #tpu.memory_space<smem>>) -> (i32, i32, i32) {
    %c0_i32 = arith.constant 0 : i32
    %c0_i32_0 = arith.constant 0 : i32
    return %c0_i32, %arg0, %arg1 : i32, i32, i32
  }
}

</mosaic_0001>

<llo_original>
// kernel: tpu_custom_call.1
$region0: #{tpu_custom_call.1}
  #allocation0 [shape = 'u32[]', space=smem, size = 0x4, offset = 0x4, fixed_abs, tag = 'smem constant byte address 0x4 - core index']
  #allocation1 [shape = 'u32[144,128]{1,0:T(1,128)}', space=vmem, size = 0x12000, scoped, tag = 'internal scratch']
  #allocation2 [shape = 's32[1]{0}', space=sflag, size = 0x4, scoped, tag = 'scoped memory for tpu_custom_call.1']
  #allocation3 [shape = 'u8[512]{0}', space=smem, size = 0x200, scoped, tag = 'prefetched SMEM operand 0']
  %s0 = inlined_call_operand.vmem [shape: s32[20], index: 0, kind: input, shape index: {}]
  %s1 = inlined_call_operand.hbm [shape: f32[2,64,512], index: 1, kind: input, shape index: {}, may-alias: {1,2}]
  %s2 = inlined_call_operand.hbm [shape: f32[2,64,512], index: 2, kind: output, shape index: {}, may-alias: {1,2}]
  %s3 = sld [smem:[#allocation0]]
  $region49: #{tpu_custom_call.1} parent=0
    _
  %s5 = ssub.s32 1, %s3
  %s6 = scalar_select 0, %s5, %s3
  %s7 = sshll.u32 %s0, 4
  %s8 = int_to_ptr.vmem [resolvable:$true] %s7
  %10 = dma.vmem_to_smem %s8, 16, [#allocation3], [#allocation2]
  %11 = dma.done [#allocation2], 16
  %12 = sfence
  $region1: #{tpu_custom_call.1} parent=0
    #allocation4 [shape = 'u8[262144]{0}', space=vmem, size = 0x40000, scoped, tag = 'input window, operand 1']
    #allocation5 [shape = 's32[2]{0}', space=sflag, size = 0x8, scoped, tag = 'scoped memory for tpu_custom_call.1']
    #allocation6 [shape = 's32[2]{0}', space=sflag, size = 0x8, scoped, tag = 'scoped memory for tpu_custom_call.1']
    #allocation7 [shape = 'u8[262144]{0}', space=vmem, size = 0x40000, scoped, tag = 'output window, operand 0']
    %13 = vsyncpa [#allocation5], 0
    %s14 = scalar_lea.sflag [#allocation5], 1
    %15 = vsyncpa %s14, 0
    %16 = vsyncpa [#allocation6], 0
    %s17 = scalar_lea.sflag [#allocation6], 1
    %18 = vsyncpa %s17, 0
    loop: start=0, step=1, limit=4
    $region2: #{tpu_custom_call.1} parent=1 // loop_pre_header
      _
    $region3: #{tpu_custom_call.1} parent=1 // loop_header
      %s20 = sphi 0, %s24
      %p21 = scmp.ge.s32.totalorder %s20, 4
      %s27 = sphi 0, %s39
      %s28 = sphi 0, %s35
      %s29 = sphi 0, %s27
      %s30 = sphi 0, %s28
      %s31 = sphi 0, %s29
      %s32 = sphi 0, %s30
      %s44 = sphi 0, %s46
      %s47 = sphi 0, %s44
      %s48 = sphi 0, %s47
      %s64 = sphi 0, %s48
      %s72 = sphi 0, %s74
      %s75 = sphi 0, %s72
      %s76 = sphi 0, %s75
      %s92 = sphi 0, %s76
    $region4: #{tpu_custom_call.1} parent=1 // loop_header_branch
      %23 = sbr.rel (%p21) target = $region8
    $region5: #{tpu_custom_call.1} parent=1 // loop_body
      %s25 = ssub.s32 %s20, 1
      %s26 = ssub.s32 %s20, 2
      %s33 = sadd.s32 1, %s28
      %p34 = scmp.ge.s32.totalorder %s33, 2
      %s35 = scalar_select %p34, 0, %s33
      %s36 = sadd.s32 1, %s27
      %s37 = scalar_select %p34, %s36, %s27
      %p38 = scmp.ge.s32.totalorder %s37, 1
      %s39 = scalar_select %p38, 0, %s37
      %s40 = ssub.s32 %s27, %s39
      %s41 = ssub.s32 %s28, %s35
      %s42 = sor.u32 %s40, %s41
      %p43 = scmp.eq.s32.totalorder %s42, 0
      %s45 = sadd.s32 %s44, 1
      %s46 = scalar_select %p43, %s44, %s45
      %p49 = pneg %p43
      %p50 = scmp.eq.s32.totalorder %s20, 1
      %p51 = por %p49, %p50
      %p52 = scmp.ne.s32.totalorder %s44, %s47
      %p53 = scmp.eq.s32.totalorder %s20, 0
      %p54 = por %p52, %p53
      %p55 = scmp.ne.s32.totalorder %s44, %s47
      %p56 = scmp.eq.s32.totalorder %s25, 1
      %p57 = por %p55, %p56
      %p58 = scmp.ne.s32.totalorder %s47, %s48
      %p59 = scmp.eq.s32.totalorder %s25, 0
      %p60 = por %p58, %p59
      %p61 = scmp.ne.s32.totalorder %s47, %s48
      %p62 = scmp.eq.s32.totalorder %s26, 1
      %p63 = por %p61, %p62
      %p65 = scmp.ne.s32.totalorder %s48, %s64
      %p66 = scmp.eq.s32.totalorder %s26, 0
      %p67 = por %p65, %p66
      %s68 = ssub.s32 %s27, %s39
      %s69 = ssub.s32 %s28, %s35
      %s70 = sor.u32 %s68, %s69
      %p71 = scmp.eq.s32.totalorder %s70, 0
      %s73 = sadd.s32 %s72, 1
      %s74 = scalar_select %p71, %s72, %s73
      %p77 = pneg %p71
      %p78 = scmp.eq.s32.totalorder %s20, 1
      %p79 = por %p77, %p78
      %p80 = scmp.ne.s32.totalorder %s72, %s75
      %p81 = scmp.eq.s32.totalorder %s20, 0
      %p82 = por %p80, %p81
      %p83 = scmp.ne.s32.totalorder %s72, %s75
      %p84 = scmp.eq.s32.totalorder %s25, 1
      %p85 = por %p83, %p84
      %p86 = scmp.ne.s32.totalorder %s75, %s76
      %p87 = scmp.eq.s32.totalorder %s25, 0
      %p88 = por %p86, %p87
      %p89 = scmp.ne.s32.totalorder %s75, %s76
      %p90 = scmp.eq.s32.totalorder %s26, 1
      %p91 = por %p89, %p90
      %p93 = scmp.ne.s32.totalorder %s76, %s92
      %p94 = scmp.eq.s32.totalorder %s26, 0
      %p95 = por %p93, %p94
      %p96 = scmp.le.s32.totalorder 1, %s20
      %p97 = scmp.lt.s32.totalorder %s20, 3
      %p98 = pnand %p96, %p97
      %p99 = pneg %p98
      // Predicated region
      $region9: #{tpu_custom_call.1} parent=5 // pred_check
        _
      $region10: #{tpu_custom_call.1} parent=5 // pred_check_branch
        %101 = sbr.rel (%p98) target = $region12
      $region11: #{tpu_custom_call.1} parent=5 // pred_region
        %s102 = ssub.s32 %s20, 1
      $region12: #{tpu_custom_call.1} parent=5 // pred_fallthru
        _
      %p103 = scmp.lt.s32.totalorder %s20, 2
      // Predicated region
      $region13: #{tpu_custom_call.1} parent=5 // pred_check
        %p104 = pneg %p103
      $region14: #{tpu_custom_call.1} parent=5 // pred_check_branch
        %106 = sbr.rel (%p104) target = $region16
      $region15: #{tpu_custom_call.1} parent=5 // pred_region
        // Predicated region
        $region17: #{tpu_custom_call.1} parent=15 // pred_check
          %p107 = pneg %p54
        $region18: #{tpu_custom_call.1} parent=15 // pred_check_branch
          %109 = sbr.rel (%p107) target = $region20
        $region19: #{tpu_custom_call.1} parent=15 // pred_region
          %s110 = sand.u32 %s44, 1
          %s111 = scalar_lea.sflag [#allocation5], %s110
          %s112 = sand.u32 %s44, 1
          %s113 = smul.addr %s112, 256
          %s114 = scalar_lea.vmem [#allocation4], %s113
          %s115 = smul.u32 8, %s27
          %s116 = smul.u32 2, %s28
          %s118 = ssub.s32 4096, 4096
          %119 = vsyncadd %s111, %s118
          %s120 = smul.addr %s115, 4
          %s121 = sadd.s32 %s116, %s120
          %s122 = smul.addr %s121, 128
          %s123 = scalar_lea.hbm %s1, %s122
          %s124 = sshll.u32 %s114, 4
          %s125 = int_to_ptr.vmem [resolvable:$true] %s124
          %130 = dma.hbm_to_vmem [thread:$0]  %s123, 4096, %s125, %s111, 512, 256, 16
        $region20: #{tpu_custom_call.1} parent=15 // pred_fallthru
          _
      $region16: #{tpu_custom_call.1} parent=5 // pred_fallthru
        _
      %p131 = scmp.le.s32.totalorder 1, %s20
      %p132 = scmp.lt.s32.totalorder %s20, 3
      %p133 = pnand %p131, %p132
      %p134 = pneg %p133
      // Predicated region
      $region21: #{tpu_custom_call.1} parent=5 // pred_check
        _
      $region22: #{tpu_custom_call.1} parent=5 // pred_check_branch
        %136 = sbr.rel (%p133) target = $region24
      $region23: #{tpu_custom_call.1} parent=5 // pred_region
        %s137 = ssub.s32 %s20, 1
        %s138 = sand.u32 %s47, 1
        %s139 = scalar_lea.sflag [#allocation5], %s138
        %s140 = sand.u32 %s47, 1
        %s141 = smul.addr %s140, 256
        %s142 = scalar_lea.vmem [#allocation4], %s141
        // Predicated region
        $region25: #{tpu_custom_call.1} parent=23 // pred_check
          %p143 = pneg %p60
        $region26: #{tpu_custom_call.1} parent=23 // pred_check_branch
          %145 = sbr.rel (%p143) target = $region28
        $region27: #{tpu_custom_call.1} parent=23 // pred_region
          %146 = dma.done %s139, 4096
        $region28: #{tpu_custom_call.1} parent=23 // pred_fallthru
          _
        %s147 = sand.u32 %s47, 1
        %s148 = scalar_lea.sflag [#allocation5], %s147
        %s149 = sand.u32 %s47, 1
        %s150 = smul.addr %s149, 256
        %s151 = scalar_lea.vmem [#allocation4], %s150
        %p152 = pneg %p60
        %p153 = pneg %p57
        %p154 = pneg %p88
        %p155 = pneg %p85
        %s156 = sand.u32 %s75, 1
        %s157 = scalar_lea.sflag [#allocation6], %s156
        %s158 = sand.u32 %s75, 1
        %s159 = smul.addr %s158, 256
        %s160 = scalar_lea.vmem [#allocation7], %s159
        %s161 = smul.u32 8, %s29
        %s162 = smul.u32 2, %s30
        %s163 = smul.u32 8, %s29
        %s164 = smul.u32 2, %s30
        %s165 = smul.u32 %s29, 64
        %s166 = smul.u32 %s30, 256
        %s167 = sadd.s32 %s165, 64
        %s168 = sadd.s32 %s166, 256
        %s169 = sld [smem:[#allocation3]]
        %s170 = sld [smem:[#allocation3 + $0x1]]
        %s171 = sld [smem:[#allocation3 + $0x2]]
        %s172 = sld [smem:[#allocation3 + $0x3]]
        %p173 = scmp.gt.s32.totalorder %s170, %s169
        %p174 = scmp.gt.s32.totalorder %s172, %s171
        %p175 = pnand %p173, %p174
        %p176 = pneg %p175
        %p177 = scmp.lt.s32.totalorder %s169, %s167
        %p178 = pnand %p176, %p177
        %p179 = pneg %p178
        %p180 = scmp.gt.s32.totalorder %s170, %s165
        %p181 = pnand %p179, %p180
        %p182 = pneg %p181
        %p183 = scmp.lt.s32.totalorder %s171, %s168
        %p184 = pnand %p182, %p183
        %p185 = pneg %p184
        %p186 = scmp.gt.s32.totalorder %s172, %s166
        %p187 = pnand %p185, %p186
        %p188 = pneg %p187
        %s189 = sld [smem:[#allocation3 + $0x4]]
        %s190 = sld [smem:[#allocation3 + $0x5]]
        %s191 = sld [smem:[#allocation3 + $0x6]]
        %s192 = sld [smem:[#allocation3 + $0x7]]
        %p193 = scmp.gt.s32.totalorder %s190, %s189
        %p194 = scmp.gt.s32.totalorder %s192, %s191
        %p195 = pnand %p193, %p194
        %p196 = pneg %p195
        %p197 = scmp.lt.s32.totalorder %s189, %s167
        %p198 = pnand %p196, %p197
        %p199 = pneg %p198
        %p200 = scmp.gt.s32.totalorder %s190, %s165
        %p201 = pnand %p199, %p200
        %p202 = pneg %p201
        %p203 = scmp.lt.s32.totalorder %s191, %s168
        %p204 = pnand %p202, %p203
        %p205 = pneg %p204
        %p206 = scmp.gt.s32.totalorder %s192, %s166
        %p207 = pnand %p205, %p206
        %p208 = pneg %p207
        %p209 = por %p188, %p208
        %s210 = sld [smem:[#allocation3 + $0x8]]
        %s211 = sld [smem:[#allocation3 + $0x9]]
        %s212 = sld [smem:[#allocation3 + $0xa]]
        %s213 = sld [smem:[#allocation3 + $0xb]]
        %p214 = scmp.gt.s32.totalorder %s211, %s210
        %p215 = scmp.gt.s32.totalorder %s213, %s212
        %p216 = pnand %p214, %p215
        %p217 = pneg %p216
        %p218 = scmp.lt.s32.totalorder %s210, %s167
        %p219 = pnand %p217, %p218
        %p220 = pneg %p219
        %p221 = scmp.gt.s32.totalorder %s211, %s165
        %p222 = pnand %p220, %p221
        %p223 = pneg %p222
        %p224 = scmp.lt.s32.totalorder %s212, %s168
        %p225 = pnand %p223, %p224
        %p226 = pneg %p225
        %p227 = scmp.gt.s32.totalorder %s213, %s166
        %p228 = pnand %p226, %p227
        %p229 = pneg %p228
        %p230 = por %p209, %p229
        %s231 = sld [smem:[#allocation3 + $0xc]]
        %s232 = sld [smem:[#allocation3 + $0xd]]
        %s233 = sld [smem:[#allocation3 + $0xe]]
        %s234 = sld [smem:[#allocation3 + $0xf]]
        %p235 = scmp.gt.s32.totalorder %s232, %s231
        %p236 = scmp.gt.s32.totalorder %s234, %s233
        %p237 = pnand %p235, %p236
        %p238 = pneg %p237
        %p239 = scmp.lt.s32.totalorder %s231, %s167
        %p240 = pnand %p238, %p239
        %p241 = pneg %p240
        %p242 = scmp.gt.s32.totalorder %s232, %s165
        %p243 = pnand %p241, %p242
        %p244 = pneg %p243
        %p245 = scmp.lt.s32.totalorder %s233, %s168
        %p246 = pnand %p244, %p245
        %p247 = pneg %p246
        %p248 = scmp.gt.s32.totalorder %s234, %s166
        %p249 = pnand %p247, %p248
        %p250 = pneg %p249
        %p251 = por %p230, %p250
        %s252 = sld [smem:[#allocation3 + $0x10]]
        %s253 = sld [smem:[#allocation3 + $0x11]]
        %s254 = sld [smem:[#allocation3 + $0x12]]
        %s255 = sld [smem:[#allocation3 + $0x13]]
        %p256 = scmp.gt.s32.totalorder %s253, %s252
        %p257 = scmp.gt.s32.totalorder %s255, %s254
        %p258 = pnand %p256, %p257
        %p259 = pneg %p258
        %p260 = scmp.lt.s32.totalorder %s252, %s167
        %p261 = pnand %p259, %p260
        %p262 = pneg %p261
        %p263 = scmp.gt.s32.totalorder %s253, %s165
        %p264 = pnand %p262, %p263
        %p265 = pneg %p264
        %p266 = scmp.lt.s32.totalorder %s254, %s168
        %p267 = pnand %p265, %p266
        %p268 = pneg %p267
        %p269 = scmp.gt.s32.totalorder %s255, %s166
        %p270 = pnand %p268, %p269
        %p271 = pneg %p270
        %p272 = por %p251, %p271
        // Predicated region
        $region29: #{tpu_custom_call.1} parent=23 // pred_check
          %p273 = pneg %p272
        $region30: #{tpu_custom_call.1} parent=23 // pred_check_branch
          %275 = sbr.rel (%p273) target = $region32
        $region31: #{tpu_custom_call.1} parent=23 // pred_region
          %v276 = vld [vmem:[%s142] sm:$0xff]
          %v277 = vld [vmem:[%s142 + $0x8] sm:$0xff]
          %v278 = vld [vmem:[%s142 + $0x10] sm:$0xff]
          %v279 = vld [vmem:[%s142 + $0x18] sm:$0xff]
          %v280 = vld [vmem:[%s142 + $0x20] sm:$0xff]
          %v281 = vld [vmem:[%s142 + $0x28] sm:$0xff]
          %v282 = vld [vmem:[%s142 + $0x30] sm:$0xff]
          %v283 = vld [vmem:[%s142 + $0x38] sm:$0xff]
          %v284 = vld [vmem:[%s142 + $0x40] sm:$0xff]
          %v285 = vld [vmem:[%s142 + $0x48] sm:$0xff]
          %v286 = vld [vmem:[%s142 + $0x50] sm:$0xff]
          %v287 = vld [vmem:[%s142 + $0x58] sm:$0xff]
          %v288 = vld [vmem:[%s142 + $0x60] sm:$0xff]
          %v289 = vld [vmem:[%s142 + $0x68] sm:$0xff]
          %v290 = vld [vmem:[%s142 + $0x70] sm:$0xff]
          %v291 = vld [vmem:[%s142 + $0x78] sm:$0xff]
          %v292 = vld [vmem:[%s142 + $0x80] sm:$0xff]
          %v293 = vld [vmem:[%s142 + $0x88] sm:$0xff]
          %v294 = vld [vmem:[%s142 + $0x90] sm:$0xff]
          %v295 = vld [vmem:[%s142 + $0x98] sm:$0xff]
          %v296 = vld [vmem:[%s142 + $0xa0] sm:$0xff]
          %v297 = vld [vmem:[%s142 + $0xa8] sm:$0xff]
          %v298 = vld [vmem:[%s142 + $0xb0] sm:$0xff]
          %v299 = vld [vmem:[%s142 + $0xb8] sm:$0xff]
          %v300 = vld [vmem:[%s142 + $0xc0] sm:$0xff]
          %v301 = vld [vmem:[%s142 + $0xc8] sm:$0xff]
          %v302 = vld [vmem:[%s142 + $0xd0] sm:$0xff]
          %v303 = vld [vmem:[%s142 + $0xd8] sm:$0xff]
          %v304 = vld [vmem:[%s142 + $0xe0] sm:$0xff]
          %v305 = vld [vmem:[%s142 + $0xe8] sm:$0xff]
          %v306 = vld [vmem:[%s142 + $0xf0] sm:$0xff]
          %v307 = vld [vmem:[%s142 + $0xf8] sm:$0xff]
          %v308 = vlaneseq
          %v309 = vshrl.u32 %v308, 7
          %v310 = vadd.s32 %v309, 8
          %v311 = vadd.s32 %v309, 16
          %v312 = vadd.s32 %v309, 24
          %v313 = vadd.s32 %v309, 32
          %v314 = vadd.s32 %v309, 40
          %v315 = vadd.s32 %v309, 48
          %v316 = vadd.s32 %v309, 56
          %v317 = vstv %s165
          %v318 = vadd.s32 %v317, %v309
          %v319 = vadd.s32 %v317, %v310
          %v320 = vadd.s32 %v317, %v311
          %v321 = vadd.s32 %v317, %v312
          %v322 = vadd.s32 %v317, %v313
          %v323 = vadd.s32 %v317, %v314
          %v324 = vadd.s32 %v317, %v315
          %v325 = vadd.s32 %v317, %v316
          %v326 = vlaneseq
          %v327 = vand.u32 %v326, 127
          %v328 = vadd.s32 %v327, 128
          %v329 = vstv %s166
          %v330 = vadd.s32 %v329, %v327
          %v331 = vadd.s32 %v329, %v328
          %s332 = sld [smem:[#allocation3]]
          %s333 = sld [smem:[#allocation3 + $0x1]]
          %s334 = sld [smem:[#allocation3 + $0x2]]
          %s335 = sld [smem:[#allocation3 + $0x3]]
          %v336 = vstv %s332
          %vm337 = vcmp.ge.s32.totalorder %v318, %v336
          %vm338 = vcmp.ge.s32.totalorder %v319, %v336
          %vm339 = vcmp.ge.s32.totalorder %v320, %v336
          %vm340 = vcmp.ge.s32.totalorder %v321, %v336
          %vm341 = vcmp.ge.s32.totalorder %v322, %v336
          %vm342 = vcmp.ge.s32.totalorder %v323, %v336
          %vm343 = vcmp.ge.s32.totalorder %v324, %v336
          %vm344 = vcmp.ge.s32.totalorder %v325, %v336
          %v345 = vstv %s333
          %vm346 = vcmp.lt.s32.totalorder %v318, %v345
          %vm347 = vcmp.lt.s32.totalorder %v319, %v345
          %vm348 = vcmp.lt.s32.totalorder %v320, %v345
          %vm349 = vcmp.lt.s32.totalorder %v321, %v345
          %vm350 = vcmp.lt.s32.totalorder %v322, %v345
          %vm351 = vcmp.lt.s32.totalorder %v323, %v345
          %vm352 = vcmp.lt.s32.totalorder %v324, %v345
          %vm353 = vcmp.lt.s32.totalorder %v325, %v345
          %vm354 = vmand %vm337, %vm346
          %vm355 = vmand %vm338, %vm347
          %vm356 = vmand %vm339, %vm348
          %vm357 = vmand %vm340, %vm349
          %vm358 = vmand %vm341, %vm350
          %vm359 = vmand %vm342, %vm351
          %vm360 = vmand %vm343, %vm352
          %vm361 = vmand %vm344, %vm353
          %v362 = vstv %s334
          %vm363 = vcmp.ge.s32.totalorder %v330, %v362
          %vm364 = vcmp.ge.s32.totalorder %v331, %v362
          %v365 = vstv %s335
          %vm366 = vcmp.lt.s32.totalorder %v330, %v365
          %vm367 = vcmp.lt.s32.totalorder %v331, %v365
          %vm368 = vmand %vm363, %vm366
          %vm369 = vmand %vm364, %vm367
          %v370 = vsel %vm354, 1, 0
          %v371 = vsel %vm355, 1, 0
          %v372 = vsel %vm356, 1, 0
          %v373 = vsel %vm357, 1, 0
          %v374 = vsel %vm358, 1, 0
          %v375 = vsel %vm359, 1, 0
          %v376 = vsel %vm360, 1, 0
          %v377 = vsel %vm361, 1, 0
          %vm378 = vcmp.eq.s32.totalorder %v370, 1
          %vm379 = vcmp.eq.s32.totalorder %v371, 1
          %vm380 = vcmp.eq.s32.totalorder %v372, 1
          %vm381 = vcmp.eq.s32.totalorder %v373, 1
          %vm382 = vcmp.eq.s32.totalorder %v374, 1
          %vm383 = vcmp.eq.s32.totalorder %v375, 1
          %vm384 = vcmp.eq.s32.totalorder %v376, 1
          %vm385 = vcmp.eq.s32.totalorder %v377, 1
          %v386 = vsel %vm368, 1, 0
          %v387 = vsel %vm369, 1, 0
          %vm388 = vcmp.eq.s32.totalorder %v386, 1
          %vm389 = vcmp.eq.s32.totalorder %v387, 1
          %vm390 = vmand %vm378, %vm388
          %vm391 = vmand %vm378, %vm389
          %vm392 = vmand %vm379, %vm388
          %vm393 = vmand %vm379, %vm389
          %vm394 = vmand %vm380, %vm388
          %vm395 = vmand %vm380, %vm389
          %vm396 = vmand %vm381, %vm388
          %vm397 = vmand %vm381, %vm389
          %vm398 = vmand %vm382, %vm388
          %vm399 = vmand %vm382, %vm389
          %vm400 = vmand %vm383, %vm388
          %vm401 = vmand %vm383, %vm389
          %vm402 = vmand %vm384, %vm388
          %vm403 = vmand %vm384, %vm389
          %vm404 = vmand %vm385, %vm388
          %vm405 = vmand %vm385, %vm389
          %s406 = sld [smem:[#allocation3 + $0x4]]
          %s407 = sld [smem:[#allocation3 + $0x5]]
          %s408 = sld [smem:[#allocation3 + $0x6]]
          %s409 = sld [smem:[#allocation3 + $0x7]]
          %v410 = vstv %s406
          %vm411 = vcmp.ge.s32.totalorder %v318, %v410
          %vm412 = vcmp.ge.s32.totalorder %v319, %v410
          %vm413 = vcmp.ge.s32.totalorder %v320, %v410
          %vm414 = vcmp.ge.s32.totalorder %v321, %v410
          %vm415 = vcmp.ge.s32.totalorder %v322, %v410
          %vm416 = vcmp.ge.s32.totalorder %v323, %v410
          %vm417 = vcmp.ge.s32.totalorder %v324, %v410
          %vm418 = vcmp.ge.s32.totalorder %v325, %v410
          %v419 = vstv %s407
          %vm420 = vcmp.lt.s32.totalorder %v318, %v419
          %vm421 = vcmp.lt.s32.totalorder %v319, %v419
          %vm422 = vcmp.lt.s32.totalorder %v320, %v419
          %vm423 = vcmp.lt.s32.totalorder %v321, %v419
          %vm424 = vcmp.lt.s32.totalorder %v322, %v419
          %vm425 = vcmp.lt.s32.totalorder %v323, %v419
          %vm426 = vcmp.lt.s32.totalorder %v324, %v419
          %vm427 = vcmp.lt.s32.totalorder %v325, %v419
          %vm428 = vmand %vm411, %vm420
          %vm429 = vmand %vm412, %vm421
          %vm430 = vmand %vm413, %vm422
          %vm431 = vmand %vm414, %vm423
          %vm432 = vmand %vm415, %vm424
          %vm433 = vmand %vm416, %vm425
          %vm434 = vmand %vm417, %vm426
          %vm435 = vmand %vm418, %vm427
          %v436 = vstv %s408
          %vm437 = vcmp.ge.s32.totalorder %v330, %v436
          %vm438 = vcmp.ge.s32.totalorder %v331, %v436
          %v439 = vstv %s409
          %vm440 = vcmp.lt.s32.totalorder %v330, %v439
          %vm441 = vcmp.lt.s32.totalorder %v331, %v439
          %vm442 = vmand %vm437, %vm440
          %vm443 = vmand %vm438, %vm441
          %v444 = vsel %vm428, 1, 0
          %v445 = vsel %vm429, 1, 0
          %v446 = vsel %vm430, 1, 0
          %v447 = vsel %vm431, 1, 0
          %v448 = vsel %vm432, 1, 0
          %v449 = vsel %vm433, 1, 0
          %v450 = vsel %vm434, 1, 0
          %v451 = vsel %vm435, 1, 0
          %vm452 = vcmp.eq.s32.totalorder %v444, 1
          %vm453 = vcmp.eq.s32.totalorder %v445, 1
          %vm454 = vcmp.eq.s32.totalorder %v446, 1
          %vm455 = vcmp.eq.s32.totalorder %v447, 1
          %vm456 = vcmp.eq.s32.totalorder %v448, 1
          %vm457 = vcmp.eq.s32.totalorder %v449, 1
          %vm458 = vcmp.eq.s32.totalorder %v450, 1
          %vm459 = vcmp.eq.s32.totalorder %v451, 1
          %v460 = vsel %vm442, 1, 0
          %v461 = vsel %vm443, 1, 0
          %vm462 = vcmp.eq.s32.totalorder %v460, 1
          %vm463 = vcmp.eq.s32.totalorder %v461, 1
          %vm464 = vmand %vm452, %vm462
          %vm465 = vmand %vm452, %vm463
          %vm466 = vmand %vm453, %vm462
          %vm467 = vmand %vm453, %vm463
          %vm468 = vmand %vm454, %vm462
          %vm469 = vmand %vm454, %vm463
          %vm470 = vmand %vm455, %vm462
          %vm471 = vmand %vm455, %vm463
          %vm472 = vmand %vm456, %vm462
          %vm473 = vmand %vm456, %vm463
          %vm474 = vmand %vm457, %vm462
          %vm475 = vmand %vm457, %vm463
          %vm476 = vmand %vm458, %vm462
          %vm477 = vmand %vm458, %vm463
          %vm478 = vmand %vm459, %vm462
          %vm479 = vmand %vm459, %vm463
          %vm480 = vmor %vm390, %vm464
          %vm481 = vmor %vm391, %vm465
          %vm482 = vmor %vm392, %vm466
          %vm483 = vmor %vm393, %vm467
          %vm484 = vmor %vm394, %vm468
          %vm485 = vmor %vm395, %vm469
          %vm486 = vmor %vm396, %vm470
          %vm487 = vmor %vm397, %vm471
          %vm488 = vmor %vm398, %vm472
          %vm489 = vmor %vm399, %vm473
          %vm490 = vmor %vm400, %vm474
          %vm491 = vmor %vm401, %vm475
          %vm492 = vmor %vm402, %vm476
          %vm493 = vmor %vm403, %vm477
          %vm494 = vmor %vm404, %vm478
          %vm495 = vmor %vm405, %vm479
          %s496 = sld [smem:[#allocation3 + $0x8]]
          %s497 = sld [smem:[#allocation3 + $0x9]]
          %s498 = sld [smem:[#allocation3 + $0xa]]
          %s499 = sld [smem:[#allocation3 + $0xb]]
          %v500 = vstv %s496
          %vm501 = vcmp.ge.s32.totalorder %v318, %v500
          %vm502 = vcmp.ge.s32.totalorder %v319, %v500
          %vm503 = vcmp.ge.s32.totalorder %v320, %v500
          %vm504 = vcmp.ge.s32.totalorder %v321, %v500
          %vm505 = vcmp.ge.s32.totalorder %v322, %v500
          %vm506 = vcmp.ge.s32.totalorder %v323, %v500
          %vm507 = vcmp.ge.s32.totalorder %v324, %v500
          %vm508 = vcmp.ge.s32.totalorder %v325, %v500
          %v509 = vstv %s497
          %vm510 = vcmp.lt.s32.totalorder %v318, %v509
          %vm511 = vcmp.lt.s32.totalorder %v319, %v509
          %vm512 = vcmp.lt.s32.totalorder %v320, %v509
          %vm513 = vcmp.lt.s32.totalorder %v321, %v509
          %vm514 = vcmp.lt.s32.totalorder %v322, %v509
          %vm515 = vcmp.lt.s32.totalorder %v323, %v509
          %vm516 = vcmp.lt.s32.totalorder %v324, %v509
          %vm517 = vcmp.lt.s32.totalorder %v325, %v509
          %vm518 = vmand %vm501, %vm510
          %vm519 = vmand %vm502, %vm511
          %vm520 = vmand %vm503, %vm512
          %vm521 = vmand %vm504, %vm513
          %vm522 = vmand %vm505, %vm514
          %vm523 = vmand %vm506, %vm515
          %vm524 = vmand %vm507, %vm516
          %vm525 = vmand %vm508, %vm517
          %v526 = vstv %s498
          %vm527 = vcmp.ge.s32.totalorder %v330, %v526
          %vm528 = vcmp.ge.s32.totalorder %v331, %v526
          %v529 = vstv %s499
          %vm530 = vcmp.lt.s32.totalorder %v330, %v529
          %vm531 = vcmp.lt.s32.totalorder %v331, %v529
          %vm532 = vmand %vm527, %vm530
          %vm533 = vmand %vm528, %vm531
          %v534 = vsel %vm518, 1, 0
          %v535 = vsel %vm519, 1, 0
          %v536 = vsel %vm520, 1, 0
          %v537 = vsel %vm521, 1, 0
          %v538 = vsel %vm522, 1, 0
          %v539 = vsel %vm523, 1, 0
          %v540 = vsel %vm524, 1, 0
          %v541 = vsel %vm525, 1, 0
          %vm542 = vcmp.eq.s32.totalorder %v534, 1
          %vm543 = vcmp.eq.s32.totalorder %v535, 1
          %vm544 = vcmp.eq.s32.totalorder %v536, 1
          %vm545 = vcmp.eq.s32.totalorder %v537, 1
          %vm546 = vcmp.eq.s32.totalorder %v538, 1
          %vm547 = vcmp.eq.s32.totalorder %v539, 1
          %vm548 = vcmp.eq.s32.totalorder %v540, 1
          %vm549 = vcmp.eq.s32.totalorder %v541, 1
          %v550 = vsel %vm532, 1, 0
          %v551 = vsel %vm533, 1, 0
          %vm552 = vcmp.eq.s32.totalorder %v550, 1
          %vm553 = vcmp.eq.s32.totalorder %v551, 1
          %vm554 = vmand %vm542, %vm552
          %vm555 = vmand %vm542, %vm553
          %vm556 = vmand %vm543, %vm552
          %vm557 = vmand %vm543, %vm553
          %vm558 = vmand %vm544, %vm552
          %vm559 = vmand %vm544, %vm553
          %vm560 = vmand %vm545, %vm552
          %vm561 = vmand %vm545, %vm553
          %vm562 = vmand %vm546, %vm552
          %vm563 = vmand %vm546, %vm553
          %vm564 = vmand %vm547, %vm552
          %vm565 = vmand %vm547, %vm553
          %vm566 = vmand %vm548, %vm552
          %vm567 = vmand %vm548, %vm553
          %vm568 = vmand %vm549, %vm552
          %vm569 = vmand %vm549, %vm553
          %vm570 = vmor %vm480, %vm554
          %vm571 = vmor %vm481, %vm555
          %vm572 = vmor %vm482, %vm556
          %vm573 = vmor %vm483, %vm557
          %vm574 = vmor %vm484, %vm558
          %vm575 = vmor %vm485, %vm559
          %vm576 = vmor %vm486, %vm560
          %vm577 = vmor %vm487, %vm561
          %vm578 = vmor %vm488, %vm562
          %vm579 = vmor %vm489, %vm563
          %vm580 = vmor %vm490, %vm564
          %vm581 = vmor %vm491, %vm565
          %vm582 = vmor %vm492, %vm566
          %vm583 = vmor %vm493, %vm567
          %vm584 = vmor %vm494, %vm568
          %vm585 = vmor %vm495, %vm569
          %s586 = sld [smem:[#allocation3 + $0xc]]
          %s587 = sld [smem:[#allocation3 + $0xd]]
          %s588 = sld [smem:[#allocation3 + $0xe]]
          %s589 = sld [smem:[#allocation3 + $0xf]]
          %v590 = vstv %s586
          %vm591 = vcmp.ge.s32.totalorder %v318, %v590
          %vm592 = vcmp.ge.s32.totalorder %v319, %v590
          %vm593 = vcmp.ge.s32.totalorder %v320, %v590
          %vm594 = vcmp.ge.s32.totalorder %v321, %v590
          %vm595 = vcmp.ge.s32.totalorder %v322, %v590
          %vm596 = vcmp.ge.s32.totalorder %v323, %v590
          %vm597 = vcmp.ge.s32.totalorder %v324, %v590
          %vm598 = vcmp.ge.s32.totalorder %v325, %v590
          %v599 = vstv %s587
          %vm600 = vcmp.lt.s32.totalorder %v318, %v599
          %vm601 = vcmp.lt.s32.totalorder %v319, %v599
          %vm602 = vcmp.lt.s32.totalorder %v320, %v599
          %vm603 = vcmp.lt.s32.totalorder %v321, %v599
          %vm604 = vcmp.lt.s32.totalorder %v322, %v599
          %vm605 = vcmp.lt.s32.totalorder %v323, %v599
          %vm606 = vcmp.lt.s32.totalorder %v324, %v599
          %vm607 = vcmp.lt.s32.totalorder %v325, %v599
          %vm608 = vmand %vm591, %vm600
          %vm609 = vmand %vm592, %vm601
          %vm610 = vmand %vm593, %vm602
          %vm611 = vmand %vm594, %vm603
          %vm612 = vmand %vm595, %vm604
          %vm613 = vmand %vm596, %vm605
          %vm614 = vmand %vm597, %vm606
          %vm615 = vmand %vm598, %vm607
          %v616 = vstv %s588
          %vm617 = vcmp.ge.s32.totalorder %v330, %v616
          %vm618 = vcmp.ge.s32.totalorder %v331, %v616
          %v619 = vstv %s589
          %vm620 = vcmp.lt.s32.totalorder %v330, %v619
          %vm621 = vcmp.lt.s32.totalorder %v331, %v619
          %vm622 = vmand %vm617, %vm620
          %vm623 = vmand %vm618, %vm621
          %v624 = vsel %vm608, 1, 0
          %v625 = vsel %vm609, 1, 0
          %v626 = vsel %vm610, 1, 0
          %v627 = vsel %vm611, 1, 0
          %v628 = vsel %vm612, 1, 0
          %v629 = vsel %vm613, 1, 0
          %v630 = vsel %vm614, 1, 0
          %v631 = vsel %vm615, 1, 0
          %vm632 = vcmp.eq.s32.totalorder %v624, 1
          %vm633 = vcmp.eq.s32.totalorder %v625, 1
          %vm634 = vcmp.eq.s32.totalorder %v626, 1
          %vm635 = vcmp.eq.s32.totalorder %v627, 1
          %vm636 = vcmp.eq.s32.totalorder %v628, 1
          %vm637 = vcmp.eq.s32.totalorder %v629, 1
          %vm638 = vcmp.eq.s32.totalorder %v630, 1
          %vm639 = vcmp.eq.s32.totalorder %v631, 1
          %v640 = vsel %vm622, 1, 0
          %v641 = vsel %vm623, 1, 0
          %vm642 = vcmp.eq.s32.totalorder %v640, 1
          %vm643 = vcmp.eq.s32.totalorder %v641, 1
          %vm644 = vmand %vm632, %vm642
          %vm645 = vmand %vm632, %vm643
          %vm646 = vmand %vm633, %vm642
          %vm647 = vmand %vm633, %vm643
          %vm648 = vmand %vm634, %vm642
          %vm649 = vmand %vm634, %vm643
          %vm650 = vmand %vm635, %vm642
          %vm651 = vmand %vm635, %vm643
          %vm652 = vmand %vm636, %vm642
          %vm653 = vmand %vm636, %vm643
          %vm654 = vmand %vm637, %vm642
          %vm655 = vmand %vm637, %vm643
          %vm656 = vmand %vm638, %vm642
          %vm657 = vmand %vm638, %vm643
          %vm658 = vmand %vm639, %vm642
          %vm659 = vmand %vm639, %vm643
          %vm660 = vmor %vm570, %vm644
          %vm661 = vmor %vm571, %vm645
          %vm662 = vmor %vm572, %vm646
          %vm663 = vmor %vm573, %vm647
          %vm664 = vmor %vm574, %vm648
          %vm665 = vmor %vm575, %vm649
          %vm666 = vmor %vm576, %vm650
          %vm667 = vmor %vm577, %vm651
          %vm668 = vmor %vm578, %vm652
          %vm669 = vmor %vm579, %vm653
          %vm670 = vmor %vm580, %vm654
          %vm671 = vmor %vm581, %vm655
          %vm672 = vmor %vm582, %vm656
          %vm673 = vmor %vm583, %vm657
          %vm674 = vmor %vm584, %vm658
          %vm675 = vmor %vm585, %vm659
          %s676 = sld [smem:[#allocation3 + $0x10]]
          %s677 = sld [smem:[#allocation3 + $0x11]]
          %s678 = sld [smem:[#allocation3 + $0x12]]
          %s679 = sld [smem:[#allocation3 + $0x13]]
          %v680 = vstv %s676
          %vm681 = vcmp.ge.s32.totalorder %v318, %v680
          %vm682 = vcmp.ge.s32.totalorder %v319, %v680
          %vm683 = vcmp.ge.s32.totalorder %v320, %v680
          %vm684 = vcmp.ge.s32.totalorder %v321, %v680
          %vm685 = vcmp.ge.s32.totalorder %v322, %v680
          %vm686 = vcmp.ge.s32.totalorder %v323, %v680
          %vm687 = vcmp.ge.s32.totalorder %v324, %v680
          %vm688 = vcmp.ge.s32.totalorder %v325, %v680
          %v689 = vstv %s677
          %vm690 = vcmp.lt.s32.totalorder %v318, %v689
          %vm691 = vcmp.lt.s32.totalorder %v319, %v689
          %vm692 = vcmp.lt.s32.totalorder %v320, %v689
          %vm693 = vcmp.lt.s32.totalorder %v321, %v689
          %vm694 = vcmp.lt.s32.totalorder %v322, %v689
          %vm695 = vcmp.lt.s32.totalorder %v323, %v689
          %vm696 = vcmp.lt.s32.totalorder %v324, %v689
          %vm697 = vcmp.lt.s32.totalorder %v325, %v689
          %vm698 = vmand %vm681, %vm690
          %vm699 = vmand %vm682, %vm691
          %vm700 = vmand %vm683, %vm692
          %vm701 = vmand %vm684, %vm693
          %vm702 = vmand %vm685, %vm694
          %vm703 = vmand %vm686, %vm695
          %vm704 = vmand %vm687, %vm696
          %vm705 = vmand %vm688, %vm697
          %v706 = vstv %s678
          %vm707 = vcmp.ge.s32.totalorder %v330, %v706
          %vm708 = vcmp.ge.s32.totalorder %v331, %v706
          %v709 = vstv %s679
          %vm710 = vcmp.lt.s32.totalorder %v330, %v709
          %vm711 = vcmp.lt.s32.totalorder %v331, %v709
          %vm712 = vmand %vm707, %vm710
          %vm713 = vmand %vm708, %vm711
          %v714 = vsel %vm698, 1, 0
          %v715 = vsel %vm699, 1, 0
          %v716 = vsel %vm700, 1, 0
          %v717 = vsel %vm701, 1, 0
          %v718 = vsel %vm702, 1, 0
          %v719 = vsel %vm703, 1, 0
          %v720 = vsel %vm704, 1, 0
          %v721 = vsel %vm705, 1, 0
          %vm722 = vcmp.eq.s32.totalorder %v714, 1
          %vm723 = vcmp.eq.s32.totalorder %v715, 1
          %vm724 = vcmp.eq.s32.totalorder %v716, 1
          %vm725 = vcmp.eq.s32.totalorder %v717, 1
          %vm726 = vcmp.eq.s32.totalorder %v718, 1
          %vm727 = vcmp.eq.s32.totalorder %v719, 1
          %vm728 = vcmp.eq.s32.totalorder %v720, 1
          %vm729 = vcmp.eq.s32.totalorder %v721, 1
          %v730 = vsel %vm712, 1, 0
          %v731 = vsel %vm713, 1, 0
          %vm732 = vcmp.eq.s32.totalorder %v730, 1
          %vm733 = vcmp.eq.s32.totalorder %v731, 1
          %vm734 = vmand %vm722, %vm732
          %vm735 = vmand %vm722, %vm733
          %vm736 = vmand %vm723, %vm732
          %vm737 = vmand %vm723, %vm733
          %vm738 = vmand %vm724, %vm732
          %vm739 = vmand %vm724, %vm733
          %vm740 = vmand %vm725, %vm732
          %vm741 = vmand %vm725, %vm733
          %vm742 = vmand %vm726, %vm732
          %vm743 = vmand %vm726, %vm733
          %vm744 = vmand %vm727, %vm732
          %vm745 = vmand %vm727, %vm733
          %vm746 = vmand %vm728, %vm732
          %vm747 = vmand %vm728, %vm733
          %vm748 = vmand %vm729, %vm732
          %vm749 = vmand %vm729, %vm733
          %vm750 = vmor %vm660, %vm734
          %vm751 = vmor %vm661, %vm735
          %vm752 = vmor %vm662, %vm736
          %vm753 = vmor %vm663, %vm737
          %vm754 = vmor %vm664, %vm738
          %vm755 = vmor %vm665, %vm739
          %vm756 = vmor %vm666, %vm740
          %vm757 = vmor %vm667, %vm741
          %vm758 = vmor %vm668, %vm742
          %vm759 = vmor %vm669, %vm743
          %vm760 = vmor %vm670, %vm744
          %vm761 = vmor %vm671, %vm745
          %vm762 = vmor %vm672, %vm746
          %vm763 = vmor %vm673, %vm747
          %vm764 = vmor %vm674, %vm748
          %vm765 = vmor %vm675, %vm749
          %v766 = vsel %vm750, 1, 0
          %v767 = vsel %vm751, 1, 0
          %v768 = vsel %vm752, 1, 0
          %v769 = vsel %vm753, 1, 0
          %v770 = vsel %vm754, 1, 0
          %v771 = vsel %vm755, 1, 0
          %v772 = vsel %vm756, 1, 0
          %v773 = vsel %vm757, 1, 0
          %v774 = vsel %vm758, 1, 0
          %v775 = vsel %vm759, 1, 0
          %v776 = vsel %vm760, 1, 0
          %v777 = vsel %vm761, 1, 0
          %v778 = vsel %vm762, 1, 0
          %v779 = vsel %vm763, 1, 0
          %v780 = vsel %vm764, 1, 0
          %v781 = vsel %vm765, 1, 0
          %vm782 = vcmp.eq.s32.totalorder %v766, 1
          %vm783 = vcmp.eq.s32.totalorder %v767, 1
          %vm784 = vcmp.eq.s32.totalorder %v768, 1
          %vm785 = vcmp.eq.s32.totalorder %v769, 1
          %vm786 = vcmp.eq.s32.totalorder %v770, 1
          %vm787 = vcmp.eq.s32.totalorder %v771, 1
          %vm788 = vcmp.eq.s32.totalorder %v772, 1
          %vm789 = vcmp.eq.s32.totalorder %v773, 1
          %vm790 = vcmp.eq.s32.totalorder %v774, 1
          %vm791 = vcmp.eq.s32.totalorder %v775, 1
          %vm792 = vcmp.eq.s32.totalorder %v776, 1
          %vm793 = vcmp.eq.s32.totalorder %v777, 1
          %vm794 = vcmp.eq.s32.totalorder %v778, 1
          %vm795 = vcmp.eq.s32.totalorder %v779, 1
          %vm796 = vcmp.eq.s32.totalorder %v780, 1
          %vm797 = vcmp.eq.s32.totalorder %v781, 1
          %v798 = vsel %vm782, 0.0, %v276
          %v799 = vsel %vm783, 0.0, %v277
          %v800 = vsel %vm784, 0.0, %v278
          %v801 = vsel %vm785, 0.0, %v279
          %v802 = vsel %vm786, 0.0, %v280
          %v803 = vsel %vm787, 0.0, %v281
          %v804 = vsel %vm788, 0.0, %v282
          %v805 = vsel %vm789, 0.0, %v283
          %v806 = vsel %vm790, 0.0, %v284
          %v807 = vsel %vm791, 0.0, %v285
          %v808 = vsel %vm792, 0.0, %v286
          %v809 = vsel %vm793, 0.0, %v287
          %v810 = vsel %vm794, 0.0, %v288
          %v811 = vsel %vm795, 0.0, %v289
          %v812 = vsel %vm796, 0.0, %v290
          %v813 = vsel %vm797, 0.0, %v291
          %v814 = vsel %vm782, 0.0, %v292
          %v815 = vsel %vm783, 0.0, %v293
          %v816 = vsel %vm784, 0.0, %v294
          %v817 = vsel %vm785, 0.0, %v295
          %v818 = vsel %vm786, 0.0, %v296
          %v819 = vsel %vm787, 0.0, %v297
          %v820 = vsel %vm788, 0.0, %v298
          %v821 = vsel %vm789, 0.0, %v299
          %v822 = vsel %vm790, 0.0, %v300
          %v823 = vsel %vm791, 0.0, %v301
          %v824 = vsel %vm792, 0.0, %v302
          %v825 = vsel %vm793, 0.0, %v303
          %v826 = vsel %vm794, 0.0, %v304
          %v827 = vsel %vm795, 0.0, %v305
          %v828 = vsel %vm796, 0.0, %v306
          %v829 = vsel %vm797, 0.0, %v307
          %830 = vst [vmem:[%s160] sm:$0xff] %v798
          %831 = vst [vmem:[%s160 + $0x8] sm:$0xff] %v799
          %832 = vst [vmem:[%s160 + $0x10] sm:$0xff] %v800
          %833 = vst [vmem:[%s160 + $0x18] sm:$0xff] %v801
          %834 = vst [vmem:[%s160 + $0x20] sm:$0xff] %v802
          %835 = vst [vmem:[%s160 + $0x28] sm:$0xff] %v803
          %836 = vst [vmem:[%s160 + $0x30] sm:$0xff] %v804
          %837 = vst [vmem:[%s160 + $0x38] sm:$0xff] %v805
          %838 = vst [vmem:[%s160 + $0x40] sm:$0xff] %v806
          %839 = vst [vmem:[%s160 + $0x48] sm:$0xff] %v807
          %840 = vst [vmem:[%s160 + $0x50] sm:$0xff] %v808
          %841 = vst [vmem:[%s160 + $0x58] sm:$0xff] %v809
          %842 = vst [vmem:[%s160 + $0x60] sm:$0xff] %v810
          %843 = vst [vmem:[%s160 + $0x68] sm:$0xff] %v811
          %844 = vst [vmem:[%s160 + $0x70] sm:$0xff] %v812
          %845 = vst [vmem:[%s160 + $0x78] sm:$0xff] %v813
          %846 = vst [vmem:[%s160 + $0x80] sm:$0xff] %v814
          %847 = vst [vmem:[%s160 + $0x88] sm:$0xff] %v815
          %848 = vst [vmem:[%s160 + $0x90] sm:$0xff] %v816
          %849 = vst [vmem:[%s160 + $0x98] sm:$0xff] %v817
          %850 = vst [vmem:[%s160 + $0xa0] sm:$0xff] %v818
          %851 = vst [vmem:[%s160 + $0xa8] sm:$0xff] %v819
          %852 = vst [vmem:[%s160 + $0xb0] sm:$0xff] %v820
          %853 = vst [vmem:[%s160 + $0xb8] sm:$0xff] %v821
          %854 = vst [vmem:[%s160 + $0xc0] sm:$0xff] %v822
          %855 = vst [vmem:[%s160 + $0xc8] sm:$0xff] %v823
          %856 = vst [vmem:[%s160 + $0xd0] sm:$0xff] %v824
          %857 = vst [vmem:[%s160 + $0xd8] sm:$0xff] %v825
          %858 = vst [vmem:[%s160 + $0xe0] sm:$0xff] %v826
          %859 = vst [vmem:[%s160 + $0xe8] sm:$0xff] %v827
          %860 = vst [vmem:[%s160 + $0xf0] sm:$0xff] %v828
          %861 = vst [vmem:[%s160 + $0xf8] sm:$0xff] %v829
        $region32: #{tpu_custom_call.1} parent=23 // pred_fallthru
          _
        %p862 = pneg %p272
        // Predicated region
        $region33: #{tpu_custom_call.1} parent=23 // pred_check
          _
        $region34: #{tpu_custom_call.1} parent=23 // pred_check_branch
          %864 = sbr.rel (%p272) target = $region36
        $region35: #{tpu_custom_call.1} parent=23 // pred_region
          %v865 = vld [vmem:[%s142] sm:$0xff]
          %v866 = vld [vmem:[%s142 + $0x8] sm:$0xff]
          %v867 = vld [vmem:[%s142 + $0x10] sm:$0xff]
          %v868 = vld [vmem:[%s142 + $0x18] sm:$0xff]
          %v869 = vld [vmem:[%s142 + $0x20] sm:$0xff]
          %v870 = vld [vmem:[%s142 + $0x28] sm:$0xff]
          %v871 = vld [vmem:[%s142 + $0x30] sm:$0xff]
          %v872 = vld [vmem:[%s142 + $0x38] sm:$0xff]
          %v873 = vld [vmem:[%s142 + $0x40] sm:$0xff]
          %v874 = vld [vmem:[%s142 + $0x48] sm:$0xff]
          %v875 = vld [vmem:[%s142 + $0x50] sm:$0xff]
          %v876 = vld [vmem:[%s142 + $0x58] sm:$0xff]
          %v877 = vld [vmem:[%s142 + $0x60] sm:$0xff]
          %v878 = vld [vmem:[%s142 + $0x68] sm:$0xff]
          %v879 = vld [vmem:[%s142 + $0x70] sm:$0xff]
          %v880 = vld [vmem:[%s142 + $0x78] sm:$0xff]
          %v881 = vld [vmem:[%s142 + $0x80] sm:$0xff]
          %v882 = vld [vmem:[%s142 + $0x88] sm:$0xff]
          %v883 = vld [vmem:[%s142 + $0x90] sm:$0xff]
          %v884 = vld [vmem:[%s142 + $0x98] sm:$0xff]
          %v885 = vld [vmem:[%s142 + $0xa0] sm:$0xff]
          %v886 = vld [vmem:[%s142 + $0xa8] sm:$0xff]
          %v887 = vld [vmem:[%s142 + $0xb0] sm:$0xff]
          %v888 = vld [vmem:[%s142 + $0xb8] sm:$0xff]
          %v889 = vld [vmem:[%s142 + $0xc0] sm:$0xff]
          %v890 = vld [vmem:[%s142 + $0xc8] sm:$0xff]
          %v891 = vld [vmem:[%s142 + $0xd0] sm:$0xff]
          %v892 = vld [vmem:[%s142 + $0xd8] sm:$0xff]
          %v893 = vld [vmem:[%s142 + $0xe0] sm:$0xff]
          %v894 = vld [vmem:[%s142 + $0xe8] sm:$0xff]
          %v895 = vld [vmem:[%s142 + $0xf0] sm:$0xff]
          %v896 = vld [vmem:[%s142 + $0xf8] sm:$0xff]
          %897 = vst [vmem:[%s160] sm:$0xff] %v865
          %898 = vst [vmem:[%s160 + $0x8] sm:$0xff] %v866
          %899 = vst [vmem:[%s160 + $0x10] sm:$0xff] %v867
          %900 = vst [vmem:[%s160 + $0x18] sm:$0xff] %v868
          %901 = vst [vmem:[%s160 + $0x20] sm:$0xff] %v869
          %902 = vst [vmem:[%s160 + $0x28] sm:$0xff] %v870
          %903 = vst [vmem:[%s160 + $0x30] sm:$0xff] %v871
          %904 = vst [vmem:[%s160 + $0x38] sm:$0xff] %v872
          %905 = vst [vmem:[%s160 + $0x40] sm:$0xff] %v873
          %906 = vst [vmem:[%s160 + $0x48] sm:$0xff] %v874
          %907 = vst [vmem:[%s160 + $0x50] sm:$0xff] %v875
          %908 = vst [vmem:[%s160 + $0x58] sm:$0xff] %v876
          %909 = vst [vmem:[%s160 + $0x60] sm:$0xff] %v877
          %910 = vst [vmem:[%s160 + $0x68] sm:$0xff] %v878
          %911 = vst [vmem:[%s160 + $0x70] sm:$0xff] %v879
          %912 = vst [vmem:[%s160 + $0x78] sm:$0xff] %v880
          %913 = vst [vmem:[%s160 + $0x80] sm:$0xff] %v881
          %914 = vst [vmem:[%s160 + $0x88] sm:$0xff] %v882
          %915 = vst [vmem:[%s160 + $0x90] sm:$0xff] %v883
          %916 = vst [vmem:[%s160 + $0x98] sm:$0xff] %v884
          %917 = vst [vmem:[%s160 + $0xa0] sm:$0xff] %v885
          %918 = vst [vmem:[%s160 + $0xa8] sm:$0xff] %v886
          %919 = vst [vmem:[%s160 + $0xb0] sm:$0xff] %v887
          %920 = vst [vmem:[%s160 + $0xb8] sm:$0xff] %v888
          %921 = vst [vmem:[%s160 + $0xc0] sm:$0xff] %v889
          %922 = vst [vmem:[%s160 + $0xc8] sm:$0xff] %v890
          %923 = vst [vmem:[%s160 + $0xd0] sm:$0xff] %v891
          %924 = vst [vmem:[%s160 + $0xd8] sm:$0xff] %v892
          %925 = vst [vmem:[%s160 + $0xe0] sm:$0xff] %v893
          %926 = vst [vmem:[%s160 + $0xe8] sm:$0xff] %v894
          %927 = vst [vmem:[%s160 + $0xf0] sm:$0xff] %v895
          %928 = vst [vmem:[%s160 + $0xf8] sm:$0xff] %v896
        $region36: #{tpu_custom_call.1} parent=23 // pred_fallthru
          _
        %s929 = sand.u32 %s75, 1
        %s930 = scalar_lea.sflag [#allocation6], %s929
        %s931 = sand.u32 %s75, 1
        %s932 = smul.addr %s931, 256
        %s933 = scalar_lea.vmem [#allocation7], %s932
        // Predicated region
        $region37: #{tpu_custom_call.1} parent=23 // pred_check
          %p934 = pneg %p85
        $region38: #{tpu_custom_call.1} parent=23 // pred_check_branch
          %936 = sbr.rel (%p934) target = $region40
        $region39: #{tpu_custom_call.1} parent=23 // pred_region
          %s937 = smul.u32 8, %s29
          %s938 = smul.u32 2, %s30
          %s940 = ssub.s32 4096, 4096
          %941 = vsyncadd %s930, %s940
          %s942 = smul.addr %s937, 4
          %s943 = sadd.s32 %s938, %s942
          %s944 = smul.addr %s943, 128
          %s945 = scalar_lea.hbm %s2, %s944
          %s946 = sshll.u32 %s933, 4
          %s947 = int_to_ptr.vmem [resolvable:$true] %s946
          %952 = dma.vmem_to_hbm [thread:$0]  %s947, 4096, %s945, %s930, 256, 512, 16
        $region40: #{tpu_custom_call.1} parent=23 // pred_fallthru
          _
      $region24: #{tpu_custom_call.1} parent=5 // pred_fallthru
        _
      %p953 = scmp.le.s32.totalorder 2, %s20
      // Predicated region
      $region41: #{tpu_custom_call.1} parent=5 // pred_check
        %p954 = pneg %p953
      $region42: #{tpu_custom_call.1} parent=5 // pred_check_branch
        %956 = sbr.rel (%p954) target = $region44
      $region43: #{tpu_custom_call.1} parent=5 // pred_region
        %s957 = ssub.s32 %s20, 2
        // Predicated region
        $region45: #{tpu_custom_call.1} parent=43 // pred_check
          %p958 = pneg %p91
        $region46: #{tpu_custom_call.1} parent=43 // pred_check_branch
          %960 = sbr.rel (%p958) target = $region48
        $region47: #{tpu_custom_call.1} parent=43 // pred_region
          %s961 = sand.u32 %s76, 1
          %s962 = scalar_lea.sflag [#allocation6], %s961
          %s963 = sand.u32 %s76, 1
          %s964 = smul.addr %s963, 256
          %s965 = scalar_lea.vmem [#allocation7], %s964
          %966 = dma.done %s962, 4096
        $region48: #{tpu_custom_call.1} parent=43 // pred_fallthru
          _
      $region44: #{tpu_custom_call.1} parent=5 // pred_fallthru
        _
    $region6: #{tpu_custom_call.1} parent=1 // loop_footer
      %s24 = sadd.s32 1, %s20
    $region7: #{tpu_custom_call.1} parent=1 // loop_footer_branch
      %19 = sbr.rel target = $region3
    $region8: #{tpu_custom_call.1} parent=1 // loop_exit
      _
    %967 = vsyncpa [#allocation5], 1
    %s968 = scalar_lea.sflag [#allocation5], 1
    %969 = vsyncpa %s968, 1
    %970 = vsyncpa [#allocation6], 1
    %s971 = scalar_lea.sflag [#allocation6], 1
    %972 = vsyncpa %s971, 1

</llo_original>
